<compile_context>
chip_gen: v7x
topology: tpu7x:2x2x1
jax: 0.10.0
libtpu: 0.0.40
codegen_flags: <defaults>
</compile_context>

<pallas_src>
import math

import jax
import jax.numpy as jnp
from jax.experimental import pallas as pl
from jax.experimental.pallas import tpu as pltpu


def _round_up(n, m):
    return ((n + m - 1) // m) * m


def _vmem_capacity_bytes():
    try:
        info = pltpu.get_tpu_info()
        cap = int(getattr(info, "vmem_capacity_bytes", 0) or 0)
        if cap > 0:
            return cap
    except Exception:
        pass
    return 64 * 1024 * 1024                  # conservative default (v7x: 64 MiB / TensorCore)


_VMEM_CAP = _vmem_capacity_bytes()
# Scoped VMEM limit: 3/4 of physical, never above 96 MiB (v5e/v6e: 128 MiB, v7x: 64 MiB).
_VMEM_LIMIT = min((_VMEM_CAP * 3) // 4, 96 * 1024 * 1024)
# Working-set budget for streamed per-row buffers; the rest is headroom for resident tables,
# compiler scratch and semaphores.
_TILE_BUDGET = (_VMEM_LIMIT * 2) // 3
_MAX_TILE_ROWS = 2048 if _VMEM_CAP >= 96 * 1024 * 1024 else 1024


def _pick_rows(n_rows, bytes_per_row, reserved_bytes=0, min_steps=4):
    """Row-tile size: as large as the VMEM budget allows (multiple of 8), capped so the grid
    keeps >= min_steps steps (v7x has 2 TensorCores sharing a "parallel" grid axis)."""
    budget = max(_TILE_BUDGET - reserved_bytes, 256 * 1024)
    t = budget // max(int(bytes_per_row), 1)
    t = min(t, _MAX_TILE_ROWS)
    t = min(t, _round_up(pl.cdiv(n_rows, min_steps), 8))
    t = max(t, 8)
    if t >= n_rows:
        return n_rows                        # single full-extent block (always a legal shape)
    return (t // 8) * 8


# ----------------------------------------------------------------------------
# Kernel 1: segment-embedding gather (one-hot matmul on the MXU) + fused add
# ----------------------------------------------------------------------------
def _seg_encode_kernel(seg_ref, x_ref, tbl_ref, o_ref):
    # seg_ref: (TN, 1) int32   segment id per token
    # x_ref:   (TN, D)         token activations
    # tbl_ref: (S,  D)         full segment-embedding table (VMEM resident, fetched once)
    # o_ref:   (TN, D)
    seg = seg_ref[...]
    tn = seg.shape[0]
    s = tbl_ref.shape[0]
    ids = jax.lax.broadcasted_iota(jnp.int32, (tn, s), 1)          # (TN, S)
    onehot = (ids == seg).astype(tbl_ref.dtype)                    # exact 0/1; bf16 MXU if table bf16
    emb = jnp.dot(onehot, tbl_ref[...],
                  preferred_element_type=jnp.float32)              # (TN, D) f32
    o_ref[...] = (x_ref[...].astype(jnp.float32) + emb).astype(o_ref.dtype)


def seg_positional_encode(x_lbd, segment_ids_lb, seg_table):
    """x_lbd: (L, B, D), segment_ids_lb: (L, B) int, seg_table: (S, D)."""
    L, B, D = x_lbd.shape
    N = L * B
    S = seg_table.shape[0]
    x_it = jnp.dtype(x_lbd.dtype).itemsize
    t_it = jnp.dtype(seg_table.dtype).itemsize

    bytes_per_row = (4 * D * x_it            # x in + out, double-buffered
                     + 2 * 128 * 4           # (tn, 1) int32 ids pad lanes 1->128, x2 buffers
                     + S * (4 + t_it)        # iota + one-hot temporaries
                     + 2 * D * 4)            # f32 upcast of x + f32 emb accumulator
    reserved = 2 * S * D * t_it              # VMEM-resident table (double-buffered allocation)
    tn = _pick_rows(N, bytes_per_row, reserved)

    x2d = x_lbd.reshape(N, D)                                 # free row-major view
    seg2d = segment_ids_lb.reshape(N, 1).astype(jnp.int32)

    out2d = pl.pallas_call(
        _seg_encode_kernel,
        out_shape=jax.ShapeDtypeStruct((N, D), x_lbd.dtype),
        grid=(pl.cdiv(N, tn),),
        in_specs=[
            pl.BlockSpec((tn, 1), lambda i: (i, 0)),          # segment ids tile
            pl.BlockSpec((tn, D), lambda i: (i, 0)),          # x tile
            pl.BlockSpec((S, D), lambda i: (0, 0)),           # full table, constant index (one DMA)
        ],
        out_specs=pl.BlockSpec((tn, D), lambda i: (i, 0)),
        compiler_params=pltpu.CompilerParams(
            dimension_semantics=("parallel",),
            vmem_limit_bytes=_VMEM_LIMIT),
    )(seg2d, x2d, seg_table)
    return out2d.reshape(L, B, D)


# ----------------------------------------------------------------------------
# Kernel 2: sinusoidal fallback — PE streamed as (tl, D), broadcast over B in-kernel
# ----------------------------------------------------------------------------
def _sin_add_lane_folded_kernel(x_ref, pe_ref, o_ref):
    # x_ref / o_ref: (TL, B*D); pe_ref: (TL, D).  Tile PE along the lane axis (exact copies).
    d = pe_ref.shape[1]
    b = x_ref.shape[1] // d
    pe = pe_ref[...].astype(jnp.float32)
    pe_wide = pe if b == 1 else jnp.concatenate([pe] * b, axis=1)
    o_ref[...] = (x_ref[...].astype(jnp.float32) + pe_wide).astype(o_ref.dtype)


def _sin_add_3d_kernel(x_ref, pe_ref, o_ref):
    # x_ref / o_ref: (TL, B, D); pe_ref: (TL, D) broadcast over the batch axis in-register.
    pe = pe_ref[...].astype(jnp.float32)[:, None, :]
    o_ref[...] = (x_ref[...].astype(jnp.float32) + pe).astype(o_ref.dtype)


def sinusoidal_positional_encode(x_lbd, pe_table):
    """x_lbd: (L, B, D), pe_table: (max_len, D) — adds pe_table[:L] broadcast over B."""
    L, B, D = x_lbd.shape
    x_it = jnp.dtype(x_lbd.dtype).itemsize
    p_it = jnp.dtype(pe_table.dtype).itemsize

    lane_folded = B < 8                      # (tl, B, D) blocks with B<8 pad sublanes 8/B-fold
    b_pad = B if lane_folded else _round_up(B, 8)
    bytes_per_row = (b_pad * D * (4 * x_it + 2 * 4)          # x + out (dbuf) + f32 temporaries
                     + D * (2 * p_it + 4))                   # pe stream (dbuf) + f32 copy
    tl = _pick_rows(L, bytes_per_row)

    pe_in = pe_table
    if tl == L and (L % 8 != 0) and L != pe_table.shape[0]:
        # Single full-L block with L not a multiple of 8: make the PE operand's leading dim its
        # full extent so the (L, D) block is legal.  Tiny (L*D) copy; only for short sequences.
        pe_in = pe_table[:L]
    pe_spec = pl.BlockSpec((tl, D), lambda i: (i, 0))        # rows selected by index_map, no [:L] pass
    params = pltpu.CompilerParams(dimension_semantics=("parallel",),
                                  vmem_limit_bytes=_VMEM_LIMIT)

    if lane_folded:
        x2d = x_lbd.reshape(L, B * D)                        # free row-major view, (8,128)-dense
        out = pl.pallas_call(
            _sin_add_lane_folded_kernel,
            out_shape=jax.ShapeDtypeStruct((L, B * D), x_lbd.dtype),
            grid=(pl.cdiv(L, tl),),
            in_specs=[pl.BlockSpec((tl, B * D), lambda i: (i, 0)), pe_spec],
            out_specs=pl.BlockSpec((tl, B * D), lambda i: (i, 0)),
            compiler_params=params,
        )(x2d, pe_in)
        return out.reshape(L, B, D)

    return pl.pallas_call(
        _sin_add_3d_kernel,
        out_shape=jax.ShapeDtypeStruct((L, B, D), x_lbd.dtype),
        grid=(pl.cdiv(L, tl),),
        in_specs=[pl.BlockSpec((tl, B, D), lambda i: (i, 0, 0)), pe_spec],
        out_specs=pl.BlockSpec((tl, B, D), lambda i: (i, 0, 0)),
        compiler_params=params,
    )(x_lbd, pe_in)


# ----------------------------------------------------------------------------
# Module-equivalent wrappers
# ----------------------------------------------------------------------------
def make_sinusoidal_table(d_model, max_len):
    """Classic Vaswani et al. sinusoidal PE table, shape (max_len, d_model)."""
    position = jnp.arange(max_len, dtype=jnp.float32)[:, None]
    div_term = jnp.exp(jnp.arange(0, d_model, 2, dtype=jnp.float32)
                       * (-math.log(10000.0) / d_model))
    pe = jnp.zeros((max_len, d_model), dtype=jnp.float32)
    pe = pe.at[:, 0::2].set(jnp.sin(position * div_term))
    pe = pe.at[:, 1::2].set(jnp.cos(position * div_term)[:, : d_model // 2])
    return pe


class CompoundPositionalEncodingPallas:
    """JAX/Pallas port of CompoundPositionalEncoding (inference/eval semantics)."""

    def __init__(self, d_model, max_segments=512, max_len=10000,
                 use_fallback=True, key=None):
        if key is None:
            key = jax.random.PRNGKey(0)
        # nn.Embedding default init ~ N(0, 1); deterministic synthetic weights.
        self.seg_embed = jax.random.normal(key, (max_segments, d_model), dtype=jnp.float32)
        self.pe = make_sinusoidal_table(d_model, max_len) if use_fallback else None

    def __call__(self, x, segment_ids=None):
        # x: (L, B, d_model), segment_ids: (L, B) int or None
        if segment_ids is None:
            if self.pe is None:
                return x
            return sinusoidal_positional_encode(x, self.pe)
        return seg_positional_encode(x, segment_ids, self.seg_embed)


# ----------------------------------------------------------------------------
# Demo / correctness check
# ----------------------------------------------------------------------------
if __name__ == "__main__":
    L, B, D = 8, 2, 32
    MAX_SEG, MAX_LEN = 16, 64

    key = jax.random.PRNGKey(0)
    kx, kseg, kemb, kx2 = jax.random.split(key, 4)

    x = jax.random.normal(kx, (L, B, D), dtype=jnp.float32)
    segment_ids = jax.random.randint(kseg, (L, B), 0, MAX_SEG, dtype=jnp.int32)

    module = CompoundPositionalEncodingPallas(
        d_model=D, max_segments=MAX_SEG, max_len=MAX_LEN, use_fallback=True, key=kemb)

    # --- segment path (main path) ---
    out_seg = jax.block_until_ready(module(x, segment_ids))
    ref_seg = x + module.seg_embed[segment_ids]
    assert out_seg.shape == (L, B, D)
    assert jnp.allclose(out_seg, ref_seg, atol=1e-5, rtol=1e-5)

    # --- fallback (sinusoidal) path, small batch -> lane-folded kernel ---
    out_fb = jax.block_until_ready(module(x, None))
    ref_fb = x + module.pe[:L][:, None, :]
    assert jnp.allclose(out_fb, ref_fb, atol=1e-5, rtol=1e-5)

    # --- partial-tile paths (tile does not divide N / odd L), no wrapper padding ---
    L2 = 5
    x2 = jax.random.normal(kx2, (L2, B, D), dtype=jnp.float32)
    seg2 = segment_ids[:L2]
    out2 = jax.block_until_ready(module(x2, seg2))
    assert jnp.allclose(out2, x2 + module.seg_embed[seg2], atol=1e-5, rtol=1e-5)
    out2f = jax.block_until_ready(module(x2, None))
    assert jnp.allclose(out2f, x2 + module.pe[:L2][:, None, :], atol=1e-5, rtol=1e-5)

    # --- wide-batch sinusoidal path (B >= 8) -> (tl, B, D) kernel ---
    B3 = 8
    x3 = jax.random.normal(kx, (L, B3, D), dtype=jnp.float32)
    out3 = jax.block_until_ready(module(x3, None))
    assert jnp.allclose(out3, x3 + module.pe[:L][:, None, :], atol=1e-5, rtol=1e-5)

    print("KERNEL_OK")
</pallas_src>

<mosaic_0001>
module attributes {stable_mosaic.version = 11 : i64} {
  func.func @_seg_encode_kernel(%arg0: i32, %arg1: memref<8x1xi32, #tpu.memory_space<vmem>>, %arg2: memref<8x32xf32, #tpu.memory_space<vmem>>, %arg3: memref<16x32xf32, #tpu.memory_space<vmem>>, %arg4: memref<8x32xf32, #tpu.memory_space<vmem>>) attributes {dimension_semantics = [#tpu.dimension_semantics<parallel>], iteration_bounds = array<i64: 2>, scalar_prefetch = 0 : i64, scratch_operands = 0 : i64, tpu.core_type = #tpu.core_type<tc>, window_params = [{transform_indices = @transform_0, window_bounds = array<i64: 8, 1>}, {transform_indices = @transform_1, window_bounds = array<i64: 8, 32>}, {pipeline_mode = #tpu.pipeline_mode<synchronous>, transform_indices = @transform_2, window_bounds = array<i64: 16, 32>}, {transform_indices = @transform_3, window_bounds = array<i64: 8, 32>}]} {
    %c0 = arith.constant 0 : index
    %c0_0 = arith.constant 0 : index
    %0 = vector.load %arg1[%c0, %c0_0] : memref<8x1xi32, #tpu.memory_space<vmem>>, vector<8x1xi32>
    %1 = tpu.iota {dimensions = array<i32: 1>} : vector<8x16xi32>
    %2 = vector.broadcast %0 : vector<8x1xi32> to vector<8x16xi32>
    %3 = arith.cmpi eq, %1, %2 : vector<8x16xi32>
    %4 = arith.extui %3 : vector<8x16xi1> to vector<8x16xi32>
    %5 = arith.sitofp %4 : vector<8x16xi32> to vector<8x16xf32>
    %c0_1 = arith.constant 0 : index
    %c0_2 = arith.constant 0 : index
    %6 = vector.load %arg3[%c0_1, %c0_2] : memref<16x32xf32, #tpu.memory_space<vmem>>, vector<16x32xf32>
    %cst = arith.constant dense<0.000000e+00> : vector<8x32xf32>
    %7 = tpu.matmul %5, %6, %cst {dimension_numbers = #tpu.dot_dimension_numbers<[1], [0], [0], [1], [0, 0, 1, 1], [], []>} : vector<8x16xf32>, vector<16x32xf32>, vector<8x32xf32> -> vector<8x32xf32>
    %c0_3 = arith.constant 0 : index
    %c0_4 = arith.constant 0 : index
    %8 = vector.load %arg2[%c0_3, %c0_4] : memref<8x32xf32, #tpu.memory_space<vmem>>, vector<8x32xf32>
    %9 = arith.addf %8, %7 : vector<8x32xf32>
    %c0_5 = arith.constant 0 : index
    %c0_6 = arith.constant 0 : index
    %10 = vector.load %arg4[%c0_5, %c0_6] : memref<8x32xf32, #tpu.memory_space<vmem>>, vector<8x32xf32>
    tpu.vector_store %arg4[%c0_5, %c0_6], %9 {strides = array<i32>} : memref<8x32xf32, #tpu.memory_space<vmem>>, vector<8x32xf32>,
    return
  }
  func.func @transform_0(%arg0: i32) -> (i32, i32) {
    %c0_i32 = arith.constant 0 : i32
    %c0_i32_0 = arith.constant 0 : i32
    return %arg0, %c0_i32 : i32, i32
  }
  func.func @transform_1(%arg0: i32) -> (i32, i32) {
    %c0_i32 = arith.constant 0 : i32
    %c0_i32_0 = arith.constant 0 : i32
    return %arg0, %c0_i32 : i32, i32
  }
  func.func @transform_2(%arg0: i32) -> (i32, i32) {
    %c0_i32 = arith.constant 0 : i32
    %c0_i32_0 = arith.constant 0 : i32
    %c0_i32_1 = arith.constant 0 : i32
    return %c0_i32, %c0_i32_0 : i32, i32
  }
  func.func @transform_3(%arg0: i32) -> (i32, i32) {
    %c0_i32 = arith.constant 0 : i32
    %c0_i32_0 = arith.constant 0 : i32
    return %arg0, %c0_i32 : i32, i32
  }
}

</mosaic_0001>

<llo_original>
// kernel: tpu_custom_call.1
$region0: #{tpu_custom_call.1}
  #allocation0 [shape = 'u32[]', space=smem, size = 0x4, offset = 0x4, fixed_abs, tag = 'smem constant byte address 0x4 - core index']
  #allocation1 [shape = 'u32[144,128]{1,0:T(1,128)}', space=vmem, size = 0x12000, scoped, tag = 'internal scratch']
  %s0 = inlined_call_operand.vmem [shape: s32[16,1], index: 0, kind: input, shape index: {}]
  %s1 = inlined_call_operand.vmem [shape: f32[16,32], index: 1, kind: input, shape index: {}]
  %s2 = inlined_call_operand.hbm [shape: f32[16,32], index: 2, kind: input, shape index: {}]
  %s3 = inlined_call_operand.hbm [shape: f32[16,32], index: 3, kind: output, shape index: {}]
  %s4 = sld [smem:[#allocation0]]
  $region49: #{tpu_custom_call.1} parent=0
    _
  %s6 = ssub.s32 1, %s4
  %s7 = scalar_select 0, %s6, %s4
  $region1: #{tpu_custom_call.1} parent=0
    #allocation2 [shape = 'u8[8192]{0}', space=vmem, size = 0x2000, scoped, tag = 'input window, operand 2, single buffered']
    #allocation3 [shape = 's32[2]{0}', space=sflag, size = 0x8, scoped, tag = 'scoped memory for tpu_custom_call.1']
    #allocation4 [shape = 's32[2]{0}', space=sflag, size = 0x8, scoped, tag = 'scoped memory for tpu_custom_call.1']
    #allocation5 [shape = 'u8[8192]{0}', space=vmem, size = 0x2000, scoped, tag = 'output window, operand 0']
    %8 = vsyncpa [#allocation3], 0
    %9 = vsyncpa [#allocation4], 0
    %s10 = scalar_lea.sflag [#allocation4], 1
    %11 = vsyncpa %s10, 0
    loop: start=0, step=1, limit=4
    $region2: #{tpu_custom_call.1} parent=1 // loop_pre_header
      _
    $region3: #{tpu_custom_call.1} parent=1 // loop_header
      %s13 = sphi 0, %s17
      %p14 = scmp.ge.s32.totalorder %s13, 4
      %s23 = sphi 0, %s25
      %s26 = sphi 0, %s23
      %s27 = sphi 0, %s26
      %s43 = sphi 0, %s27
      %s49 = sphi 0, %s51
      %s52 = sphi 0, %s49
      %s53 = sphi 0, %s52
      %s69 = sphi 0, %s53
      %s73 = sphi 0, %s73
      %s75 = sphi 0, %s73
      %s76 = sphi 0, %s75
      %s90 = sphi 0, %s76
      %s96 = sphi 0, %s98
      %s99 = sphi 0, %s96
      %s100 = sphi 0, %s99
      %s116 = sphi 0, %s100
    $region4: #{tpu_custom_call.1} parent=1 // loop_header_branch
      %16 = sbr.rel (%p14) target = $region8
    $region5: #{tpu_custom_call.1} parent=1 // loop_body
      %s18 = ssub.s32 %s13, 1
      %s19 = ssub.s32 %s13, 2
      %s20 = sadd.s32 %s13, 1
      %s21 = ssub.s32 %s13, %s20
      %p22 = scmp.eq.s32.totalorder %s21, 0
      %s24 = sadd.s32 %s23, 1
      %s25 = scalar_select %p22, %s23, %s24
      %p28 = pneg %p22
      %p29 = scmp.eq.s32.totalorder %s13, 1
      %p30 = por %p28, %p29
      %p31 = scmp.ne.s32.totalorder %s23, %s26
      %p32 = scmp.eq.s32.totalorder %s13, 0
      %p33 = por %p31, %p32
      %p34 = scmp.ne.s32.totalorder %s23, %s26
      %p35 = scmp.eq.s32.totalorder %s18, 1
      %p36 = por %p34, %p35
      %p37 = scmp.ne.s32.totalorder %s26, %s27
      %p38 = scmp.eq.s32.totalorder %s18, 0
      %p39 = por %p37, %p38
      %p40 = scmp.ne.s32.totalorder %s26, %s27
      %p41 = scmp.eq.s32.totalorder %s19, 1
      %p42 = por %p40, %p41
      %p44 = scmp.ne.s32.totalorder %s27, %s43
      %p45 = scmp.eq.s32.totalorder %s19, 0
      %p46 = por %p44, %p45
      %s47 = ssub.s32 %s13, %s20
      %p48 = scmp.eq.s32.totalorder %s47, 0
      %s50 = sadd.s32 %s49, 1
      %s51 = scalar_select %p48, %s49, %s50
      %p54 = pneg %p48
      %p55 = scmp.eq.s32.totalorder %s13, 1
      %p56 = por %p54, %p55
      %p57 = scmp.ne.s32.totalorder %s49, %s52
      %p58 = scmp.eq.s32.totalorder %s13, 0
      %p59 = por %p57, %p58
      %p60 = scmp.ne.s32.totalorder %s49, %s52
      %p61 = scmp.eq.s32.totalorder %s18, 1
      %p62 = por %p60, %p61
      %p63 = scmp.ne.s32.totalorder %s52, %s53
      %p64 = scmp.eq.s32.totalorder %s18, 0
      %p65 = por %p63, %p64
      %p66 = scmp.ne.s32.totalorder %s52, %s53
      %p67 = scmp.eq.s32.totalorder %s19, 1
      %p68 = por %p66, %p67
      %p70 = scmp.ne.s32.totalorder %s53, %s69
      %p71 = scmp.eq.s32.totalorder %s19, 0
      %p72 = por %p70, %p71
      %s74 = sadd.s32 %s73, 1
      %p77 = scmp.eq.s32.totalorder %s13, 1
      %p78 = scmp.ne.s32.totalorder %s73, %s75
      %p79 = scmp.eq.s32.totalorder %s13, 0
      %p80 = por %p78, %p79
      %p81 = scmp.ne.s32.totalorder %s73, %s75
      %p82 = scmp.eq.s32.totalorder %s18, 1
      %p83 = por %p81, %p82
      %p84 = scmp.ne.s32.totalorder %s75, %s76
      %p85 = scmp.eq.s32.totalorder %s18, 0
      %p86 = por %p84, %p85
      %p87 = scmp.ne.s32.totalorder %s75, %s76
      %p88 = scmp.eq.s32.totalorder %s19, 1
      %p89 = por %p87, %p88
      %p91 = scmp.ne.s32.totalorder %s76, %s90
      %p92 = scmp.eq.s32.totalorder %s19, 0
      %p93 = por %p91, %p92
      %s94 = ssub.s32 %s13, %s20
      %p95 = scmp.eq.s32.totalorder %s94, 0
      %s97 = sadd.s32 %s96, 1
      %s98 = scalar_select %p95, %s96, %s97
      %p101 = pneg %p95
      %p102 = scmp.eq.s32.totalorder %s13, 1
      %p103 = por %p101, %p102
      %p104 = scmp.ne.s32.totalorder %s96, %s99
      %p105 = scmp.eq.s32.totalorder %s13, 0
      %p106 = por %p104, %p105
      %p107 = scmp.ne.s32.totalorder %s96, %s99
      %p108 = scmp.eq.s32.totalorder %s18, 1
      %p109 = por %p107, %p108
      %p110 = scmp.ne.s32.totalorder %s99, %s100
      %p111 = scmp.eq.s32.totalorder %s18, 0
      %p112 = por %p110, %p111
      %p113 = scmp.ne.s32.totalorder %s99, %s100
      %p114 = scmp.eq.s32.totalorder %s19, 1
      %p115 = por %p113, %p114
      %p117 = scmp.ne.s32.totalorder %s100, %s116
      %p118 = scmp.eq.s32.totalorder %s19, 0
      %p119 = por %p117, %p118
      %p120 = scmp.le.s32.totalorder 1, %s13
      %p121 = scmp.lt.s32.totalorder %s13, 3
      %p122 = pnand %p120, %p121
      %p123 = pneg %p122
      // Predicated region
      $region9: #{tpu_custom_call.1} parent=5 // pred_check
        _
      $region10: #{tpu_custom_call.1} parent=5 // pred_check_branch
        %125 = sbr.rel (%p122) target = $region12
      $region11: #{tpu_custom_call.1} parent=5 // pred_region
        %s126 = ssub.s32 %s13, 1
        // Predicated region
        $region13: #{tpu_custom_call.1} parent=11 // pred_check
          %p127 = pneg %p86
        $region14: #{tpu_custom_call.1} parent=11 // pred_check_branch
          %129 = sbr.rel (%p127) target = $region16
        $region15: #{tpu_custom_call.1} parent=11 // pred_region
          %s131 = ssub.s32 256, 256
          %132 = vsyncadd [#allocation3], %s131
          %s133 = sshll.u32 [#allocation2], 4
          %s134 = int_to_ptr.vmem [resolvable:$true] %s133
          %139 = dma.hbm_to_vmem [thread:$0]  %s2, 256, %s134, [#allocation3], 128, 128, 8
        $region16: #{tpu_custom_call.1} parent=11 // pred_fallthru
          _
      $region12: #{tpu_custom_call.1} parent=5 // pred_fallthru
        _
      %p140 = scmp.lt.s32.totalorder %s13, 2
      // Predicated region
      $region17: #{tpu_custom_call.1} parent=5 // pred_check
        %p141 = pneg %p140
      $region18: #{tpu_custom_call.1} parent=5 // pred_check_branch
        %143 = sbr.rel (%p141) target = $region20
      $region19: #{tpu_custom_call.1} parent=5 // pred_region
        // Predicated region
        $region21: #{tpu_custom_call.1} parent=19 // pred_check
          %p144 = pneg %p33
        $region22: #{tpu_custom_call.1} parent=19 // pred_check_branch
          %146 = sbr.rel (%p144) target = $region24
        $region23: #{tpu_custom_call.1} parent=19 // pred_region
          %p147 = scmp.lt.s32.totalorder %s13, 1
          %s148 = scalar_select %p147, %s13, 1
          %s149 = smul.addr %s148, 8
          %s150 = scalar_lea.vmem %s0, %s149
        $region24: #{tpu_custom_call.1} parent=19 // pred_fallthru
          _
        // Predicated region
        $region25: #{tpu_custom_call.1} parent=19 // pred_check
          %p151 = pneg %p59
        $region26: #{tpu_custom_call.1} parent=19 // pred_check_branch
          %153 = sbr.rel (%p151) target = $region28
        $region27: #{tpu_custom_call.1} parent=19 // pred_region
          %p154 = scmp.lt.s32.totalorder %s13, 1
          %s155 = scalar_select %p154, %s13, 1
          %s156 = smul.addr %s155, 8
          %s157 = scalar_lea.vmem %s1, %s156
        $region28: #{tpu_custom_call.1} parent=19 // pred_fallthru
          _
      $region20: #{tpu_custom_call.1} parent=5 // pred_fallthru
        _
      %p158 = scmp.le.s32.totalorder 1, %s13
      %p159 = scmp.lt.s32.totalorder %s13, 3
      %p160 = pnand %p158, %p159
      %p161 = pneg %p160
      // Predicated region
      $region29: #{tpu_custom_call.1} parent=5 // pred_check
        _
      $region30: #{tpu_custom_call.1} parent=5 // pred_check_branch
        %163 = sbr.rel (%p160) target = $region32
      $region31: #{tpu_custom_call.1} parent=5 // pred_region
        %s164 = ssub.s32 %s13, 1
        // Predicated region
        $region33: #{tpu_custom_call.1} parent=31 // pred_check
          %p165 = pneg %p86
        $region34: #{tpu_custom_call.1} parent=31 // pred_check_branch
          %167 = sbr.rel (%p165) target = $region36
        $region35: #{tpu_custom_call.1} parent=31 // pred_region
          %168 = dma.done [#allocation3], 256
        $region36: #{tpu_custom_call.1} parent=31 // pred_fallthru
          _
        %p169 = scmp.lt.s32.totalorder %s18, 1
        %s170 = scalar_select %p169, %s18, 1
        %s171 = smul.addr %s170, 8
        %s172 = scalar_lea.vmem %s0, %s171
        %p173 = pneg %p39
        %p174 = pneg %p36
        %p175 = scmp.lt.s32.totalorder %s18, 1
        %s176 = scalar_select %p175, %s18, 1
        %s177 = smul.addr %s176, 8
        %s178 = scalar_lea.vmem %s1, %s177
        %p179 = pneg %p65
        %p180 = pneg %p62
        %p181 = pneg %p86
        %p182 = pneg %p83
        %p183 = pneg %p112
        %p184 = pneg %p109
        %s185 = sand.u32 %s99, 1
        %s186 = scalar_lea.sflag [#allocation4], %s185
        %s187 = sand.u32 %s99, 1
        %s188 = smul.addr %s187, 8
        %s189 = scalar_lea.vmem [#allocation5], %s188
        %p190 = scmp.lt.s32.totalorder %s18, 1
        %s191 = scalar_select %p190, %s18, 1
        %s192 = smul.addr %s191, 8
        %s193 = scalar_lea.vmem %s0, %s192
        %p194 = scmp.lt.s32.totalorder %s18, 1
        %s195 = scalar_select %p194, %s18, 1
        %s196 = smul.addr %s195, 8
        %s197 = scalar_lea.vmem %s1, %s196
        %v198 = vld [vmem:[%s193] sm:$0xff]
        %v199 = vlaneseq
        %v200 = vand.u32 %v199, 127
        %201 = vset.pattern.permute.xlu0 0
        %202 = vperm.xlu0 %201, %v198
        %v203 = vpop.permute.xlu0 %202
        %vm204 = vcmp.eq.s32.totalorder %v200, %v203
        %v205 = vsel %vm204, 1, 0
        %v206 = vcvt.s32.f32 %v205
        %v207 = vld [vmem:[#allocation2] sm:$0xff]
        %v208 = vld [vmem:[#allocation2 + $0x8] sm:$0xff]
        %vm209 = vcmask 130048
        %v211 = vsel %vm209, %v206, 0
        %213 = vmatprep.subr.mxu0 0.0
        %214 = vmatpush1.msra.mxu0 %v207
        %215 = vmatprep.subr.mxu0 0.0
        %216 = vmatpush1.msra.mxu0 %v208
        %217 = vmatprep.subr.mxu0 0.0
        %218 = vmatpush1.msra.mxu0 0.0
        %219 = vmatprep.subr.mxu0 0.0
        %220 = vmatpush1.msra.mxu0 0.0
        %221 = vmatprep.subr.mxu0 0.0
        %222 = vmatpush1.msra.mxu0 0.0
        %223 = vmatprep.subr.mxu0 0.0
        %224 = vmatpush1.msra.mxu0 0.0
        %225 = vmatprep.subr.mxu0 0.0
        %226 = vmatpush1.msra.mxu0 0.0
        %227 = vmatprep.subr.mxu0 0.0
        %228 = vmatpush1.msra.mxu0 0.0
        %229 = vmatprep.subr.mxu0 0.0
        %230 = vmatpush1.msra.mxu0 0.0
        %231 = vmatprep.subr.mxu0 0.0
        %232 = vmatpush1.msra.mxu0 0.0
        %233 = vmatprep.subr.mxu0 0.0
        %234 = vmatpush1.msra.mxu0 0.0
        %235 = vmatprep.subr.mxu0 0.0
        %236 = vmatpush1.msra.mxu0 0.0
        %237 = vmatprep.subr.mxu0 0.0
        %238 = vmatpush1.msra.mxu0 0.0
        %239 = vmatprep.subr.mxu0 0.0
        %240 = vmatpush1.msra.mxu0 0.0
        %241 = vmatprep.subr.mxu0 0.0
        %242 = vmatpush1.msra.mxu0 0.0
        %243 = vmatprep.subr.mxu0 0.0
        %244 = vmatpush1.msra.mxu0 0.0
        %245 = vmatprep.subr.mxu0 0.0
        %246 = vmatpush1.msra.mxu0 0.0
        %247 = vmatprep.subr.mxu0 0.0
        %248 = vmatpush1.msra.mxu0 0.0
        %249 = vmatprep.subr.mxu0 0.0
        %250 = vmatpush1.msra.mxu0 0.0
        %251 = vmatprep.subr.mxu0 0.0
        %252 = vmatpush1.msra.mxu0 0.0
        %253 = vmatprep.subr.mxu0 0.0
        %254 = vmatpush1.msra.mxu0 0.0
        %255 = vmatprep.subr.mxu0 0.0
        %256 = vmatpush1.msra.mxu0 0.0
        %257 = vmatprep.subr.mxu0 0.0
        %258 = vmatpush1.msra.mxu0 0.0
        %259 = vmatprep.subr.mxu0 0.0
        %260 = vmatpush1.msra.mxu0 0.0
        %261 = vmatprep.subr.mxu0 0.0
        %262 = vmatpush1.msra.mxu0 0.0
        %263 = vmatprep.subr.mxu0 0.0
        %264 = vmatpush1.msra.mxu0 0.0
        %265 = vmatprep.subr.mxu0 0.0
        %266 = vmatpush1.msra.mxu0 0.0
        %267 = vmatprep.subr.mxu0 0.0
        %268 = vmatpush1.msra.mxu0 0.0
        %269 = vmatprep.subr.mxu0 0.0
        %270 = vmatpush1.msra.mxu0 0.0
        %271 = vmatprep.subr.mxu0 0.0
        %272 = vmatpush1.msra.mxu0 0.0
        %273 = vmatprep.subr.mxu0 0.0
        %274 = vmatpush1.msra.mxu0 0.0
        %275 = vmatprep.subr.mxu0 0.0
        %276 = vmatpush1.msra.mxu0 0.0
        %277 = vmatprep.mubr.f32.mxu0 0.0
        %278 = vmatmul.mubr.f32.gmra.mrb[0].mxu0 %v211
        %v279 = vpop.f32.mrb[0].mxu0
        %v280 = vadd.f32 0.0, %v279
        %v281 = vpop.f32.mrb[0].mxu0
        %282 = vdwg.mxu0
        %v283 = vld [vmem:[%s197] sm:$0xff]
        %v284 = vadd.f32 %v283, %v280
        %vm285 = vcmask 261120
        %286 = vst.msk [vmem:[%s189] sm:$0xff] %vm285, %v284
        %s287 = sand.u32 %s99, 1
        %s288 = scalar_lea.sflag [#allocation4], %s287
        %s289 = sand.u32 %s99, 1
        %s290 = smul.addr %s289, 8
        %s291 = scalar_lea.vmem [#allocation5], %s290
        // Predicated region
        $region37: #{tpu_custom_call.1} parent=31 // pred_check
          %p292 = pneg %p109
        $region38: #{tpu_custom_call.1} parent=31 // pred_check_branch
          %294 = sbr.rel (%p292) target = $region40
        $region39: #{tpu_custom_call.1} parent=31 // pred_region
          %s296 = ssub.s32 128, 128
          %297 = vsyncadd %s288, %s296
          %s298 = smul.addr %s18, 128
          %s299 = scalar_lea.hbm %s3, %s298
          %s301 = sshll.u32 %s291, 4
          %s302 = int_to_ptr.vmem [resolvable:$true] %s301
          %304 = dma.vmem_to_hbm [thread:$0]  %s302, 128, %s299, %s288
        $region40: #{tpu_custom_call.1} parent=31 // pred_fallthru
          _
      $region32: #{tpu_custom_call.1} parent=5 // pred_fallthru
        _
      %p305 = scmp.le.s32.totalorder 2, %s13
      // Predicated region
      $region41: #{tpu_custom_call.1} parent=5 // pred_check
        %p306 = pneg %p305
      $region42: #{tpu_custom_call.1} parent=5 // pred_check_branch
        %308 = sbr.rel (%p306) target = $region44
      $region43: #{tpu_custom_call.1} parent=5 // pred_region
        %s309 = ssub.s32 %s13, 2
        // Predicated region
        $region45: #{tpu_custom_call.1} parent=43 // pred_check
          %p310 = pneg %p115
        $region46: #{tpu_custom_call.1} parent=43 // pred_check_branch
          %312 = sbr.rel (%p310) target = $region48
        $region47: #{tpu_custom_call.1} parent=43 // pred_region
          %s313 = sand.u32 %s100, 1
          %s314 = scalar_lea.sflag [#allocation4], %s313
          %s315 = sand.u32 %s100, 1
          %s316 = smul.addr %s315, 8
          %s317 = scalar_lea.vmem [#allocation5], %s316
          %318 = dma.done %s314, 128
        $region48: #{tpu_custom_call.1} parent=43 // pred_fallthru
          _
      $region44: #{tpu_custom_call.1} parent=5 // pred_fallthru
        _
    $region6: #{tpu_custom_call.1} parent=1 // loop_footer
      %s17 = sadd.s32 1, %s13
    $region7: #{tpu_custom_call.1} parent=1 // loop_footer_branch
      %12 = sbr.rel target = $region3
    $region8: #{tpu_custom_call.1} parent=1 // loop_exit
      _
    %319 = vsyncpa [#allocation3], 1
    %s320 = scalar_lea.sflag [#allocation3], 1
    %321 = vsyncpa %s320, 1
    %322 = vsyncpa [#allocation4], 1
    %s323 = scalar_lea.sflag [#allocation4], 1
    %324 = vsyncpa %s323, 1

</llo_original>
